<compile_context>
chip_gen: v7x
topology: tpu7x:2x2x1
jax: 0.10.0
libtpu: 0.0.40
codegen_flags: <defaults>
</compile_context>

<pallas_src>
import jax
import jax.numpy as jnp
from jax.experimental import pallas as pl
from jax.experimental.pallas import tpu as pltpu

D = 10  # feature dimension fixed by the module (weight = randn(10))


def _sigmoid(z):
    # sigmoid(z) = 0.5 * (1 + tanh(z / 2)); one EUP op, no exact divide on the VALU.
    return 0.5 + 0.5 * jnp.tanh(0.5 * z)


# ----------------------------- single-sample path ---------------------------
def _logreg_single_kernel(x_ref, w_ref, b_ref, o_ref):
    # x_ref: (1, D) VMEM, w_ref: (1, D) VMEM, b_ref: (1,) SMEM, o_ref: (1, 1) VMEM
    x = x_ref[...].astype(jnp.float32)
    w = w_ref[...].astype(jnp.float32)
    z = jnp.sum(x * w, axis=-1, keepdims=True) + b_ref[0]   # VPU mul + XLU lane reduce
    o_ref[...] = _sigmoid(z)


def logistic_regression(vector, weight, bias):
    """Module forward: vector (D,), weight (D,), bias (1,) -> (1,) float32."""
    x = vector.reshape(1, D)
    w = weight.reshape(1, D)
    b = bias.reshape(1).astype(jnp.float32)

    out = pl.pallas_call(
        _logreg_single_kernel,
        out_shape=jax.ShapeDtypeStruct((1, 1), jnp.float32),
        in_specs=[
            pl.BlockSpec((1, D), lambda: (0, 0)),
            pl.BlockSpec((1, D), lambda: (0, 0)),
            pl.BlockSpec(memory_space=pltpu.MemorySpace.SMEM),   # scalar bias
        ],
        out_specs=pl.BlockSpec((1, 1), lambda: (0, 0)),
        cost_estimate=pl.CostEstimate(
            flops=2 * D + 3,
            transcendentals=1,
            bytes_accessed=4 * (2 * D + 2),
        ),
    )(x, w, b)
    return out.reshape(1)  # match torch: scalar dot + bias(1,) -> (1,)


# ------------------------------- batched path --------------------------------
def _logreg_batched_kernel(xT_ref, w_ref, b_ref, o_ref):
    # xT_ref: (D, TB) VMEM (native dtype, cast in-kernel)
    # w_ref : (D, 1)  VMEM f32 (broadcast along lanes)
    # b_ref : (1,)    SMEM f32
    # o_ref : (1, TB) VMEM f32  -- full-lane, unmasked store
    x = xT_ref[...].astype(jnp.float32)
    z = jnp.sum(x * w_ref[...], axis=0, keepdims=True) + b_ref[0]   # sublane reduce
    o_ref[...] = _sigmoid(z)


def _pick_tile(b_pad, tb_max):
    """Largest lane tile (multiple of 128, <= tb_max) dividing b_pad with grid >= 2."""
    for tb in range(tb_max, 127, -128):
        if b_pad % tb == 0 and b_pad // tb >= 2:
            return tb
    return min(b_pad, tb_max)   # only hit when b_pad == 128


def logistic_regression_batched(x, weight, bias, *, tb_max=1024):
    """Batched variant: x (B, D) -> (B,) probabilities; any B (padded internally)."""
    B, d = x.shape
    assert d == D
    b_pad = ((B + 127) // 128) * 128

    # Lane-dense layout: batch on the 128-lane axis. Cast happens in-kernel.
    xT = jnp.swapaxes(x, 0, 1)                      # (D, B)
    if b_pad != B:
        xT = jnp.pad(xT, ((0, 0), (0, b_pad - B)))  # (D, b_pad)
    w = weight.reshape(D, 1).astype(jnp.float32)
    b = bias.reshape(1).astype(jnp.float32)

    tb = _pick_tile(b_pad, tb_max)
    grid = (b_pad // tb,)

    out = pl.pallas_call(
        _logreg_batched_kernel,
        out_shape=jax.ShapeDtypeStruct((1, b_pad), jnp.float32),
        grid=grid,
        in_specs=[
            pl.BlockSpec((D, tb), lambda i: (0, i)),
            pl.BlockSpec((D, 1), lambda i: (0, 0)),
            pl.BlockSpec(memory_space=pltpu.MemorySpace.SMEM),
        ],
        out_specs=pl.BlockSpec((1, tb), lambda i: (0, i)),
        compiler_params=pltpu.CompilerParams(
            dimension_semantics=("parallel",),        # shard grid across TCs on v7x
            vmem_limit_bytes=32 * 1024 * 1024,        # explicit; tiles are tiny anyway
        ),
        cost_estimate=pl.CostEstimate(
            flops=b_pad * (2 * D + 3),
            transcendentals=b_pad,
            bytes_accessed=x.dtype.itemsize * b_pad * D + 4 * (D + 1 + b_pad),
        ),
    )(xT, w, b)
    return out.reshape(b_pad)[:B]


if __name__ == "__main__":
    key = jax.random.PRNGKey(0)
    k_x, k_w, k_b, k_xb = jax.random.split(key, 4)

    # Module parameters / input (weight ~ randn(10), bias ~ randn(1), vector ~ randn(10))
    vector = jax.random.normal(k_x, (D,), dtype=jnp.float32)
    weight = jax.random.normal(k_w, (D,), dtype=jnp.float32)
    bias = jax.random.normal(k_b, (1,), dtype=jnp.float32)

    # --- module-equivalent forward (single sample) ---
    out = jax.block_until_ready(logistic_regression(vector, weight, bias))
    ref = jax.nn.sigmoid(jnp.dot(vector, weight) + bias)
    assert out.shape == (1,)
    assert jnp.allclose(out, ref, atol=1e-5), (out, ref)

    # --- batched variant: lane-dense layout, grid >= 2, and padding path ---
    for B in (512, 37):
        xb = jax.random.normal(k_xb, (B, D), dtype=jnp.float32)
        outb = jax.block_until_ready(logistic_regression_batched(xb, weight, bias))
        refb = jax.nn.sigmoid(xb @ weight + bias)
        assert outb.shape == (B,)
        assert jnp.allclose(outb, refb, atol=1e-5), (B, outb, refb)

    print("KERNEL_OK")
</pallas_src>

<mosaic_0001>
module attributes {stable_mosaic.version = 11 : i64} {
  func.func @_logreg_single_kernel(%arg0: memref<1x10xf32, #tpu.memory_space<vmem>>, %arg1: memref<1x10xf32, #tpu.memory_space<vmem>>, %arg2: memref<1xf32, #tpu.memory_space<smem>>, %arg3: memref<1x1xf32, #tpu.memory_space<vmem>>) attributes {dimension_semantics = [], scalar_prefetch = 0 : i64, scratch_operands = 0 : i64, tpu.core_type = #tpu.core_type<tc>} {
    %c0 = arith.constant 0 : index
    %c0_0 = arith.constant 0 : index
    %0 = vector.load %arg0[%c0, %c0_0] : memref<1x10xf32, #tpu.memory_space<vmem>>, vector<1x10xf32>
    %c0_1 = arith.constant 0 : index
    %c0_2 = arith.constant 0 : index
    %1 = vector.load %arg1[%c0_1, %c0_2] : memref<1x10xf32, #tpu.memory_space<vmem>>, vector<1x10xf32>
    %2 = arith.mulf %0, %1 : vector<1x10xf32>
    %cst = arith.constant dense<0.000000e+00> : vector<1xf32>
    %3 = vector.multi_reduction <add>, %2, %cst [1] : vector<1x10xf32> to vector<1xf32>
    %4 = vector.shape_cast %3 : vector<1xf32> to vector<1x1xf32>
    %c0_3 = arith.constant 0 : index
    %5 = memref.load %arg2[%c0_3] : memref<1xf32, #tpu.memory_space<smem>>
    %6 = vector.broadcast %5 : f32 to vector<1x1xf32>
    %7 = arith.addf %4, %6 : vector<1x1xf32>
    %cst_4 = arith.constant 5.000000e-01 : f32
    %8 = vector.broadcast %cst_4 : f32 to vector<1x1xf32>
    %9 = arith.mulf %8, %7 : vector<1x1xf32>
    %10 = math.tanh %9 : vector<1x1xf32>
    %cst_5 = arith.constant 5.000000e-01 : f32
    %11 = vector.broadcast %cst_5 : f32 to vector<1x1xf32>
    %12 = arith.mulf %11, %10 : vector<1x1xf32>
    %cst_6 = arith.constant 5.000000e-01 : f32
    %13 = vector.broadcast %cst_6 : f32 to vector<1x1xf32>
    %14 = arith.addf %13, %12 : vector<1x1xf32>
    %c0_7 = arith.constant 0 : index
    %c0_8 = arith.constant 0 : index
    %15 = vector.load %arg3[%c0_7, %c0_8] : memref<1x1xf32, #tpu.memory_space<vmem>>, vector<1x1xf32>
    tpu.vector_store %arg3[%c0_7, %c0_8], %14 {strides = array<i32>} : memref<1x1xf32, #tpu.memory_space<vmem>>, vector<1x1xf32>,
    return
  }
}

</mosaic_0001>

<llo_original>
// kernel: tpu_custom_call.1
$region0: #{tpu_custom_call.1}
  #allocation0 [shape = 'u32[]', space=smem, size = 0x4, offset = 0x4, fixed_abs, tag = 'smem constant byte address 0x4 - core index']
  #allocation1 [shape = 'u32[144,128]{1,0:T(1,128)}', space=vmem, size = 0x12000, scoped, tag = 'internal scratch']
  #allocation2 [shape = 'f32[1]{0:T(128)S(6)}', space=smem, size = 0x200, scoped, tag = 'scoped memory for tpu_custom_call.1']
  %s0 = inlined_call_operand.vmem [shape: f32[1,10], index: 0, kind: input, shape index: {}]
  %s1 = inlined_call_operand.vmem [shape: f32[1,10], index: 1, kind: input, shape index: {}]
  %s2 = inlined_call_operand.<no memory space> [shape: f32[1], index: 2, kind: input, shape index: {}]
  %s3 = inlined_call_operand.hbm [shape: f32[1,1], index: 3, kind: output, shape index: {}]
  %s4 = sld [smem:[#allocation0]]
  $region22: #{tpu_custom_call.1} parent=0
    _
  %s6 = ssub.s32 1, %s4
  %s7 = scalar_select 0, %s6, %s4
  %8 = sst [smem:[#allocation2]] %s2
  $region1: #{tpu_custom_call.1} parent=0
    #allocation3 [shape = 'u8[512]{0}', space=vmem, size = 0x400, scoped, tag = 'output window, operand 0, single buffered']
    #allocation4 [shape = 's32[1]{0}', space=sflag, size = 0x4, scoped, tag = 'scoped memory for tpu_custom_call.1']
    %9 = vsyncpa [#allocation4], 0
    // Predicated region
    $region2: #{tpu_custom_call.1} parent=1 // pred_check
      _
    $region3: #{tpu_custom_call.1} parent=1 // pred_check_branch
      %11 = sbr.rel (0) target = $region5
    $region4: #{tpu_custom_call.1} parent=1 // pred_region
      _
    $region5: #{tpu_custom_call.1} parent=1 // pred_fallthru
      _
    // Predicated region
    $region6: #{tpu_custom_call.1} parent=1 // pred_check
      _
    $region7: #{tpu_custom_call.1} parent=1 // pred_check_branch
      %13 = sbr.rel (0) target = $region9
    $region8: #{tpu_custom_call.1} parent=1 // pred_region
      _
    $region9: #{tpu_custom_call.1} parent=1 // pred_fallthru
      _
    // Predicated region
    $region10: #{tpu_custom_call.1} parent=1 // pred_check
      _
    $region11: #{tpu_custom_call.1} parent=1 // pred_check_branch
      %15 = sbr.rel (0) target = $region13
    $region12: #{tpu_custom_call.1} parent=1 // pred_region
      _
    $region13: #{tpu_custom_call.1} parent=1 // pred_fallthru
      _
    %v16 = vld [vmem:[%s0] sm:$0x1]
    %v17 = vld [vmem:[%s1] sm:$0x1]
    %v18 = vmul.f32 %v16, %v17
    %vm19 = vcmask 73728
    %v20 = vsel %vm19, %v18, 0.0
    %21 = vadd.xlane.f32.xlu0 %v20
    %v22 = vpop.xlane.xlu0 %21
    %s23 = sld [smem:[#allocation2]]
    %v24 = vstv %s23
    %v25 = vadd.f32 %v22, %v24
    %v26 = vmul.f32 %v25, 0.5
    %v27 = vtanh.pop %v26
    %v28 = vmul.f32 %v27, 0.5
    %v29 = vadd.f32 %v28, 0.5
    %vm30 = vcmask 0
    %31 = vst.msk [vmem:[#allocation3] sm:$0x1] %vm30, %v29
    // Predicated region
    $region14: #{tpu_custom_call.1} parent=1 // pred_check
      _
    $region15: #{tpu_custom_call.1} parent=1 // pred_check_branch
      %33 = sbr.rel (0) target = $region17
    $region16: #{tpu_custom_call.1} parent=1 // pred_region
      %s35 = ssub.s32 16, 16
      %36 = vsyncadd [#allocation4], %s35
      %s38 = sshll.u32 [#allocation3], 4
      %s39 = int_to_ptr.vmem [resolvable:$true] %s38
      %41 = dma.vmem_to_hbm [thread:$0]  %s39, 16, %s3, [#allocation4]
    $region17: #{tpu_custom_call.1} parent=1 // pred_fallthru
      _
    // Predicated region
    $region18: #{tpu_custom_call.1} parent=1 // pred_check
      _
    $region19: #{tpu_custom_call.1} parent=1 // pred_check_branch
      %43 = sbr.rel (0) target = $region21
    $region20: #{tpu_custom_call.1} parent=1 // pred_region
      %44 = dma.done [#allocation4], 16
    $region21: #{tpu_custom_call.1} parent=1 // pred_fallthru
      _
    %45 = vsyncpa [#allocation4], 1

</llo_original>
